<compile_context>
chip_gen: v5e
topology: v5e:2x2
jax: 0.10.0
libtpu: 0.0.40
codegen_flags: <defaults>
</compile_context>

<pallas_src>
import jax
import jax.numpy as jnp
from jax.experimental import pallas as pl
from jax.experimental.pallas import tpu as pltpu

_EPSILON = 1e-07
_INV_2EPS = 1.0 / (2.0 + _EPSILON)

# Deterministic normalizer constants (CIFAR-10 style per-channel mean/std);
# box.get_normalizer() is not available here, so these are baked in.
# TODO(synk): plumb the real box normalizer constants if they differ.
_NORM_MEAN = (0.4914, 0.4822, 0.4465)
_NORM_STD = (0.2470, 0.2435, 0.2616)


def _blend_kernel(x_ref, q_ref, r_ref, o_ref):
    # x_ref: (TB, CHWp)  batch tile of flattened images (f32 or bf16)
    # q_ref: (1,  CHWp)  1 - mask          (f32, broadcast over batch)
    # r_ref: (1,  CHWp)  mask * pattern    (f32, broadcast over batch)
    # o_ref: (TB, CHWp)
    x = x_ref[...].astype(jnp.float32)
    o_ref[...] = (x * q_ref[...] + r_ref[...]).astype(o_ref.dtype)


def _round_up(a, b):
    return -(-a // b) * b


def regression_model_forward(x, mask_tanh, pattern_tanh,
                             norm_mean=_NORM_MEAN, norm_std=_NORM_STD,
                             io_dtype=jnp.float32):
    """x: [B, C, S, S] (NCHW), mask_tanh: [1, S, S], pattern_tanh: [C, S, S]."""
    B, C, S, _ = x.shape
    HW = S * S
    CHW = C * HW

    # ---- Batch-invariant precompute (tiny, outside the kernel / grid) ----
    mask = jnp.tanh(mask_tanh.astype(jnp.float32)) * _INV_2EPS + 0.5        # (1, S, S)
    pattern = jnp.tanh(pattern_tanh.astype(jnp.float32)) * _INV_2EPS + 0.5  # (C, S, S)
    mean = jnp.asarray([float(m) for m in norm_mean[:C]], jnp.float32).reshape(C, 1, 1)
    std = jnp.asarray([float(s) for s in norm_std[:C]], jnp.float32).reshape(C, 1, 1)
    pattern = (pattern - mean) / std                                        # (C, S, S)

    q = jnp.broadcast_to(1.0 - mask, (C, S, S)).reshape(1, CHW)             # (1, CHW)
    r = (mask * pattern).reshape(1, CHW)                                    # (1, CHW)

    # ---- Lane padding: CHW -> multiple of 128 (unmasked stores for any S) ----
    CHWp = _round_up(CHW, 128)
    x2 = x.reshape(B, CHW).astype(io_dtype)
    if CHWp != CHW:
        pad = CHWp - CHW
        x2 = jnp.pad(x2, ((0, 0), (0, pad)))
        q = jnp.pad(q, ((0, 0), (0, pad)))
        r = jnp.pad(r, ((0, 0), (0, pad)))

    # ---- Tile-size derivation (VMEM / roofline) ----
    row_bytes = CHWp * jnp.dtype(io_dtype).itemsize
    target_block_bytes = 2 * 1024 * 1024            # ~2 MiB block -> near HBM roofline
    vmem_budget_bytes = 12 * 1024 * 1024            # x+out tiles, double-buffered, v5e-safe

    target_rows = max(8, (target_block_bytes // row_bytes) // 8 * 8)
    budget_rows = max(8, (vmem_budget_bytes // (4 * row_bytes)) // 8 * 8)
    tb = min(target_rows, budget_rows, _round_up(B, 8))

    # Megacore (v7x, 2 TCs): force >= 2 parallel grid steps when batch allows.
    if _round_up(B, 8) >= 16 and _round_up(B, tb) // tb < 2:
        tb = max(8, _round_up(-(-_round_up(B, 8) // 2), 8))

    Bp = _round_up(B, tb)
    if Bp != B:
        x2 = jnp.pad(x2, ((0, Bp - B), (0, 0)))
    grid = (Bp // tb,)

    out2 = pl.pallas_call(
        _blend_kernel,
        out_shape=jax.ShapeDtypeStruct((Bp, CHWp), io_dtype),
        grid=grid,
        in_specs=[
            pl.BlockSpec((tb, CHWp), lambda i: (i, 0)),  # x (batch-tiled, streamed)
            pl.BlockSpec((1, CHWp), lambda i: (0, 0)),   # q = 1 - mask
            pl.BlockSpec((1, CHWp), lambda i: (0, 0)),   # r = mask * pattern_norm
        ],
        out_specs=pl.BlockSpec((tb, CHWp), lambda i: (i, 0)),
        compiler_params=pltpu.CompilerParams(dimension_semantics=("parallel",)),
    )(x2, q, r)

    return out2[:B, :CHW].reshape(B, C, S, S).astype(io_dtype)


def _reference(x, mask_tanh, pattern_tanh):
    mask = jnp.tanh(mask_tanh) / (2.0 + _EPSILON) + 0.5            # [1, S, S]
    pattern = jnp.tanh(pattern_tanh) / (2.0 + _EPSILON) + 0.5      # [C, S, S]
    c = pattern.shape[0]
    mean = jnp.asarray(_NORM_MEAN[:c]).reshape(c, 1, 1)
    std = jnp.asarray(_NORM_STD[:c]).reshape(c, 1, 1)
    pattern = (pattern - mean) / std
    return (1.0 - mask[None]) * x + mask[None] * pattern[None]


if __name__ == "__main__":
    B, C, S = 2, 3, 16  # small deterministic test shape (CHW = 768)

    key = jax.random.PRNGKey(0)
    kx, km, kp = jax.random.split(key, 3)
    x = jax.random.normal(kx, (B, C, S, S), dtype=jnp.float32)

    # Parameters: __init__ starts from torch.ones; perturb slightly so the test
    # exercises non-trivial values.
    mask_tanh = jnp.ones((1, S, S), jnp.float32) + 0.1 * jax.random.normal(km, (1, S, S))
    pattern_tanh = jnp.ones((C, S, S), jnp.float32) + 0.1 * jax.random.normal(kp, (C, S, S))

    out = regression_model_forward(x, mask_tanh, pattern_tanh)
    out = jax.block_until_ready(out)

    ref = _reference(x, mask_tanh, pattern_tanh)
    assert out.shape == (B, C, S, S)
    assert jnp.allclose(out, ref, atol=2e-5, rtol=2e-5), "mismatch vs reference"

    print("KERNEL_OK")
</pallas_src>

<mosaic_0001>
module attributes {stable_mosaic.version = 11 : i64} {
  func.func @_blend_kernel(%arg0: i32, %arg1: memref<8x768xf32, #tpu.memory_space<vmem>>, %arg2: memref<1x768xf32, #tpu.memory_space<vmem>>, %arg3: memref<1x768xf32, #tpu.memory_space<vmem>>, %arg4: memref<8x768xf32, #tpu.memory_space<vmem>>) attributes {dimension_semantics = [#tpu.dimension_semantics<parallel>], iteration_bounds = array<i64: 1>, scalar_prefetch = 0 : i64, scratch_operands = 0 : i64, tpu.core_type = #tpu.core_type<tc>, window_params = [{transform_indices = @transform_0, window_bounds = array<i64: 8, 768>}, {pipeline_mode = #tpu.pipeline_mode<synchronous>, transform_indices = @transform_1, window_bounds = array<i64: 1, 768>}, {pipeline_mode = #tpu.pipeline_mode<synchronous>, transform_indices = @transform_2, window_bounds = array<i64: 1, 768>}, {transform_indices = @transform_3, window_bounds = array<i64: 8, 768>}]} {
    %c0 = arith.constant 0 : index
    %c0_0 = arith.constant 0 : index
    %0 = vector.load %arg1[%c0, %c0_0] : memref<8x768xf32, #tpu.memory_space<vmem>>, vector<8x768xf32>
    %c0_1 = arith.constant 0 : index
    %c0_2 = arith.constant 0 : index
    %1 = vector.load %arg2[%c0_1, %c0_2] : memref<1x768xf32, #tpu.memory_space<vmem>>, vector<1x768xf32>
    %2 = vector.broadcast %1 : vector<1x768xf32> to vector<8x768xf32>
    %3 = arith.mulf %0, %2 : vector<8x768xf32>
    %c0_3 = arith.constant 0 : index
    %c0_4 = arith.constant 0 : index
    %4 = vector.load %arg3[%c0_3, %c0_4] : memref<1x768xf32, #tpu.memory_space<vmem>>, vector<1x768xf32>
    %5 = vector.broadcast %4 : vector<1x768xf32> to vector<8x768xf32>
    %6 = arith.addf %3, %5 : vector<8x768xf32>
    %c0_5 = arith.constant 0 : index
    %c0_6 = arith.constant 0 : index
    %7 = vector.load %arg4[%c0_5, %c0_6] : memref<8x768xf32, #tpu.memory_space<vmem>>, vector<8x768xf32>
    tpu.vector_store %arg4[%c0_5, %c0_6], %6 {strides = array<i32>} : memref<8x768xf32, #tpu.memory_space<vmem>>, vector<8x768xf32>,
    return
  }
  func.func @transform_0(%arg0: i32) -> (i32, i32) {
    %c0_i32 = arith.constant 0 : i32
    %c0_i32_0 = arith.constant 0 : i32
    return %arg0, %c0_i32 : i32, i32
  }
  func.func @transform_1(%arg0: i32) -> (i32, i32) {
    %c0_i32 = arith.constant 0 : i32
    %c0_i32_0 = arith.constant 0 : i32
    %c0_i32_1 = arith.constant 0 : i32
    return %c0_i32, %c0_i32_0 : i32, i32
  }
  func.func @transform_2(%arg0: i32) -> (i32, i32) {
    %c0_i32 = arith.constant 0 : i32
    %c0_i32_0 = arith.constant 0 : i32
    %c0_i32_1 = arith.constant 0 : i32
    return %c0_i32, %c0_i32_0 : i32, i32
  }
  func.func @transform_3(%arg0: i32) -> (i32, i32) {
    %c0_i32 = arith.constant 0 : i32
    %c0_i32_0 = arith.constant 0 : i32
    return %arg0, %c0_i32 : i32, i32
  }
}

</mosaic_0001>

<llo_original>
// kernel: tpu_custom_call.1
$region0: #{tpu_custom_call.1}
  #allocation0 [shape = 'u32[]', space=smem, size = 0x4, offset = 0x4, fixed_abs, tag = 'smem constant byte address 0x4 - core index']
  #allocation1 [shape = 'u32[72,128]{1,0:T(1,128)}', space=vmem, size = 0x9000, scoped, tag = 'internal scratch']
  %s0 = inlined_call_operand.hbm [shape: f32[8,768], index: 0, kind: input, shape index: {}]
  %s1 = inlined_call_operand.hbm [shape: f32[1,768], index: 1, kind: input, shape index: {}]
  %s2 = inlined_call_operand.hbm [shape: f32[1,768], index: 2, kind: input, shape index: {}]
  %s3 = inlined_call_operand.hbm [shape: f32[8,768], index: 3, kind: output, shape index: {}]
  %s4 = sld [smem:[#allocation0]]
  $region34: #{tpu_custom_call.1} parent=0
    _
  %s6 = ssub.s32 1, %s4
  %s7 = scalar_select 0, %s6, %s4
  $region1: #{tpu_custom_call.1} parent=0
    #allocation2 [shape = 'u8[24576]{0}', space=vmem, size = 0x6000, scoped, tag = 'input window, operand 0, single buffered']
    #allocation3 [shape = 's32[1]{0}', space=sflag, size = 0x4, scoped, tag = 'scoped memory for tpu_custom_call.1']
    #allocation4 [shape = 's32[1]{0}', space=sflag, size = 0x4, scoped, tag = 'scoped memory for tpu_custom_call.1']
    #allocation5 [shape = 'u8[3072]{0}', space=vmem, size = 0xc00, scoped, tag = 'input window, operand 1, single buffered']
    #allocation6 [shape = 's32[1]{0}', space=sflag, size = 0x4, scoped, tag = 'scoped memory for tpu_custom_call.1']
    #allocation7 [shape = 'u8[3072]{0}', space=vmem, size = 0xc00, scoped, tag = 'input window, operand 2, single buffered']
    #allocation8 [shape = 'u8[24576]{0}', space=vmem, size = 0x6000, scoped, tag = 'output window, operand 0, single buffered']
    %8 = vsyncpa [#allocation3], 0
    %9 = vsyncpa [#allocation6], 0
    %10 = vsyncpa [#allocation4], 0
    // Predicated region
    $region2: #{tpu_custom_call.1} parent=1 // pred_check
      _
    $region3: #{tpu_custom_call.1} parent=1 // pred_check_branch
      %12 = sbr.rel (0) target = $region5
    $region4: #{tpu_custom_call.1} parent=1 // pred_region
      %14 = vsyncadd [#allocation3], 0
      %s16 = sshll.u32 %s0, 4
      %s17 = int_to_ptr.hbm [resolvable:$true] %s16
      %s18 = sshll.u32 [#allocation2], 4
      %s19 = int_to_ptr.vmem [resolvable:$true] %s18
      %21 = dma.hbm_to_vmem [thread:$0]  %s17, 768, %s19, [#allocation3]
    $region5: #{tpu_custom_call.1} parent=1 // pred_fallthru
      _
    // Predicated region
    $region6: #{tpu_custom_call.1} parent=1 // pred_check
      _
    $region7: #{tpu_custom_call.1} parent=1 // pred_check_branch
      %23 = sbr.rel (0) target = $region9
    $region8: #{tpu_custom_call.1} parent=1 // pred_region
      %25 = vsyncadd [#allocation6], 0
      %s27 = sshll.u32 %s1, 4
      %s28 = int_to_ptr.hbm [resolvable:$true] %s27
      %s29 = sshll.u32 [#allocation5], 4
      %s30 = int_to_ptr.vmem [resolvable:$true] %s29
      %32 = dma.hbm_to_vmem [thread:$0]  %s28, 96, %s30, [#allocation6]
    $region9: #{tpu_custom_call.1} parent=1 // pred_fallthru
      _
    // Predicated region
    $region10: #{tpu_custom_call.1} parent=1 // pred_check
      _
    $region11: #{tpu_custom_call.1} parent=1 // pred_check_branch
      %34 = sbr.rel (0) target = $region13
    $region12: #{tpu_custom_call.1} parent=1 // pred_region
      %36 = vsyncadd [#allocation6], 0
      %s38 = sshll.u32 %s2, 4
      %s39 = int_to_ptr.hbm [resolvable:$true] %s38
      %s40 = sshll.u32 [#allocation7], 4
      %s41 = int_to_ptr.vmem [resolvable:$true] %s40
      %43 = dma.hbm_to_vmem [thread:$0]  %s39, 96, %s41, [#allocation6]
    $region13: #{tpu_custom_call.1} parent=1 // pred_fallthru
      _
    // Predicated region
    $region14: #{tpu_custom_call.1} parent=1 // pred_check
      _
    $region15: #{tpu_custom_call.1} parent=1 // pred_check_branch
      %45 = sbr.rel (0) target = $region17
    $region16: #{tpu_custom_call.1} parent=1 // pred_region
      %47 = dma.done [#allocation3], 768
    $region17: #{tpu_custom_call.1} parent=1 // pred_fallthru
      _
    // Predicated region
    $region18: #{tpu_custom_call.1} parent=1 // pred_check
      _
    $region19: #{tpu_custom_call.1} parent=1 // pred_check_branch
      %49 = sbr.rel (0) target = $region21
    $region20: #{tpu_custom_call.1} parent=1 // pred_region
      %51 = dma.done [#allocation6], 96
    $region21: #{tpu_custom_call.1} parent=1 // pred_fallthru
      _
    // Predicated region
    $region22: #{tpu_custom_call.1} parent=1 // pred_check
      _
    $region23: #{tpu_custom_call.1} parent=1 // pred_check_branch
      %53 = sbr.rel (0) target = $region25
    $region24: #{tpu_custom_call.1} parent=1 // pred_region
      %55 = dma.done [#allocation6], 96
    $region25: #{tpu_custom_call.1} parent=1 // pred_fallthru
      _
    %v56 = vld [vmem:[#allocation2] sm:$0xff]
    %v57 = vld [vmem:[#allocation2 + $0x8] sm:$0xff]
    %v58 = vld [vmem:[#allocation2 + $0x10] sm:$0xff]
    %v59 = vld [vmem:[#allocation2 + $0x18] sm:$0xff]
    %v60 = vld [vmem:[#allocation2 + $0x20] sm:$0xff]
    %v61 = vld [vmem:[#allocation2 + $0x28] sm:$0xff]
    %v62 = vld [vmem:[#allocation5] sm:$0x3f]
    %v64 = vperm.slane %v62, 0
    %v65 = vperm.slane %v62, 1
    %v66 = vperm.slane %v62, 2
    %v67 = vperm.slane %v62, 3
    %v68 = vperm.slane %v62, 4
    %v69 = vperm.slane %v62, 5
    %v76 = vmul.f32 %v56, %v64
    %v77 = vmul.f32 %v57, %v65
    %v78 = vmul.f32 %v58, %v66
    %v79 = vmul.f32 %v59, %v67
    %v80 = vmul.f32 %v60, %v68
    %v81 = vmul.f32 %v61, %v69
    %v82 = vld [vmem:[#allocation7] sm:$0x3f]
    %v84 = vperm.slane %v82, 0
    %v85 = vperm.slane %v82, 1
    %v86 = vperm.slane %v82, 2
    %v87 = vperm.slane %v82, 3
    %v88 = vperm.slane %v82, 4
    %v89 = vperm.slane %v82, 5
    %v96 = vadd.f32 %v76, %v84
    %v97 = vadd.f32 %v77, %v85
    %v98 = vadd.f32 %v78, %v86
    %v99 = vadd.f32 %v79, %v87
    %v100 = vadd.f32 %v80, %v88
    %v101 = vadd.f32 %v81, %v89
    %102 = vst [vmem:[#allocation8] sm:$0xff] %v96
    %103 = vst [vmem:[#allocation8 + $0x8] sm:$0xff] %v97
    %104 = vst [vmem:[#allocation8 + $0x10] sm:$0xff] %v98
    %105 = vst [vmem:[#allocation8 + $0x18] sm:$0xff] %v99
    %106 = vst [vmem:[#allocation8 + $0x20] sm:$0xff] %v100
    %107 = vst [vmem:[#allocation8 + $0x28] sm:$0xff] %v101
    // Predicated region
    $region26: #{tpu_custom_call.1} parent=1 // pred_check
      _
    $region27: #{tpu_custom_call.1} parent=1 // pred_check_branch
      %109 = sbr.rel (0) target = $region29
    $region28: #{tpu_custom_call.1} parent=1 // pred_region
      %111 = vsyncadd [#allocation4], 0
      %s113 = sshll.u32 [#allocation8], 4
      %s114 = int_to_ptr.vmem [resolvable:$true] %s113
      %s115 = sshll.u32 %s3, 4
      %s116 = int_to_ptr.hbm [resolvable:$true] %s115
      %118 = dma.vmem_to_hbm [thread:$0]  %s114, 768, %s116, [#allocation4]
    $region29: #{tpu_custom_call.1} parent=1 // pred_fallthru
      _
    // Predicated region
    $region30: #{tpu_custom_call.1} parent=1 // pred_check
      _
    $region31: #{tpu_custom_call.1} parent=1 // pred_check_branch
      %120 = sbr.rel (0) target = $region33
    $region32: #{tpu_custom_call.1} parent=1 // pred_region
      %122 = dma.done [#allocation4], 768
    $region33: #{tpu_custom_call.1} parent=1 // pred_fallthru
      _
    %123 = vsyncpa [#allocation3], 1
    %124 = vsyncpa [#allocation6], 1
    %125 = vsyncpa [#allocation4], 1

</llo_original>
